<compile_context>
chip_gen: v7x
topology: tpu7x:2x2x1
jax: 0.10.0
libtpu: 0.0.40
codegen_flags: <defaults>
</compile_context>

<pallas_src>
import functools

import jax
import jax.numpy as jnp
from jax.experimental import pallas as pl
from jax.experimental.pallas import tpu as pltpu


def _round_up(n, m):
    return (n + m - 1) // m * m


# ----------------------------------------------------------------------------
# pltpu.roll direction probe (cached: runs at most once per process)
# ----------------------------------------------------------------------------
# The kernel needs shifted[i] = x[i + s].  Probe the rotate direction once on
# device so the shift sign is always right, independent of roll semantics.
@functools.lru_cache(maxsize=None)
def _probe_roll_sign():
    def probe_kernel(x_ref, o_ref):
        o_ref[...] = pltpu.roll(x_ref[...], 1, axis=1)

    x = jnp.tile(jnp.arange(128, dtype=jnp.int32)[None, :], (8, 1))
    out = pl.pallas_call(
        probe_kernel, out_shape=jax.ShapeDtypeStruct((8, 128), jnp.int32)
    )(x)
    # np.roll-like (element j -> j+1): out[0, 1] == 0  =>  use shift = (-s) % N
    return -1 if int(out[0, 1]) == 0 else 1


# ----------------------------------------------------------------------------
# Fused ResBlockDown kernel (Bt batch images per grid step, lane-concatenated)
# ----------------------------------------------------------------------------
def _resblock_kernel(*refs, shifts, learnable_sc, downsample):
    # Ref order: x, w1, w2, masks, [wsc, bsc], [pool], out
    it = iter(refs)
    x_ref = next(it)                       # (1, CI, Lb)   f32, Lb = Bt*HW
    w1_ref = next(it)                      # (CO, 9*CI)    bf16
    w2_ref = next(it)                      # (CO, 9*CO)    bf16
    m_ref = next(it)                       # (9, Lb)       f32 per-tap validity masks
    wsc_ref = next(it) if learnable_sc else None   # (CO, CI)  bf16
    bsc_ref = next(it) if learnable_sc else None   # (CO, 1)   f32
    pool_ref = next(it) if downsample else None    # (Lb, Lbo) bf16 block-diag pool op
    o_ref = next(it)                       # (1, CO, Lbo)  f32

    x = x_ref[0]                                            # (CI, Lb) f32

    def conv3x3(act, w_ref):
        # Build the im2col operand in registers: 9 shifted + masked copies of
        # `act`, concatenated along the sublane axis (each piece is an aligned
        # 8-row f32 tile), cast once to bf16, then ONE lane-dense MXU matmul:
        # (CO, 9C) x (9C, Lb) -> (CO, Lb), f32 accumulate.
        taps = []
        for t, sh in enumerate(shifts):
            if sh == 0:                                     # centre tap: identity, all-valid
                taps.append(act)
            else:
                taps.append(m_ref[pl.ds(t, 1), :] * pltpu.roll(act, sh, axis=1))
        col = jnp.concatenate(taps, axis=0)                 # (9*C, Lb) f32
        return jnp.dot(w_ref[...], col.astype(jnp.bfloat16),
                       preferred_element_type=jnp.float32)

    # residual path: relu -> c1 -> relu -> c2
    h = conv3x3(jnp.maximum(x, 0.0), w1_ref)                # (CO, Lb)
    res = conv3x3(jnp.maximum(h, 0.0), w2_ref)              # (CO, Lb)

    # shortcut path: optional 1x1 conv (bias is linear through the pool -> added last)
    if learnable_sc:
        sc = jnp.dot(wsc_ref[...], x.astype(jnp.bfloat16),
                     preferred_element_type=jnp.float32)    # (CO, Lb)
    else:
        sc = x                                              # ci == co in this case

    tot = res + sc                                          # (CO, Lb) f32

    # 2x2 average pool applied ONCE to the sum (matmul vs block-diag pool op).
    if downsample:
        tot = jnp.dot(tot.astype(jnp.bfloat16), pool_ref[...],
                      preferred_element_type=jnp.float32)   # (CO, Lbo)
    if learnable_sc:
        tot = tot + bsc_ref[...]                            # (CO, 1) broadcast over lanes

    o_ref[0] = tot.astype(o_ref.dtype)


# ----------------------------------------------------------------------------
# Builder: packs constants once, returns a jitted forward (NCHW in / NCHW out)
# ----------------------------------------------------------------------------
def make_res_block_down(params, x_shape, *, downsample=True, batch_tile=None):
    B, Cin, H, W = x_shape
    Cout = params['c1_w'].shape[0]
    learnable_sc = 'csc_w' in params                # torch: in_dim != out_dim
    if not learnable_sc:
        assert Cin == Cout
    assert (not downsample) or (H % 2 == 0 and W % 2 == 0)

    CI, CO = _round_up(Cin, 8), _round_up(Cout, 8)  # sublane-pad tiny channel dims
    HW = H * W                                      # per-image lane extent
    Ho, Wo = (H // 2, W // 2) if downsample else (H, W)
    HWo = Ho * Wo

    # Images per grid step: make the output lane width a multiple of 128 when
    # possible (full unmasked vst) while amortizing per-step overhead.  For
    # larger batches this still leaves multiple "parallel" grid steps (v7x TCs).
    if batch_tile is None:
        batch_tile = min(B, max(1, (128 + HWo - 1) // HWo))
    Bt = batch_tile
    Bp = _round_up(B, Bt)
    nsteps = Bp // Bt
    Lb, Lbo = Bt * HW, Bt * HWo

    roll_sign = _probe_roll_sign()

    # ---- constants, computed ONCE per weight set (hoisted out of forward) ----
    # Weights: torch OIHW -> (CO, 9*C_pad); column index = tap*C_pad + in_channel.
    def pack3x3(w):
        o, i = w.shape[0], w.shape[1]
        op, ip = _round_up(o, 8), _round_up(i, 8)
        wt = jnp.transpose(w, (0, 2, 3, 1))                         # (O, 3, 3, I)
        wt = jnp.pad(wt, ((0, op - o), (0, 0), (0, 0), (0, ip - i)))
        return wt.reshape(op, 9 * ip).astype(jnp.bfloat16)

    w1 = pack3x3(params['c1_w'])                                    # (CO, 9*CI)
    w2 = pack3x3(params['c2_w'])                                    # (CO, 9*CO)

    # Per-tap lane shifts (modulo the CONCATENATED lane length) + boundary masks
    # (tiled per image).  Cross-image roll wrap-around only ever hits positions
    # whose mask is already zero (the tap's (h+oy, w+ox) is out of the image).
    hh = jnp.arange(H)[:, None]
    ww = jnp.arange(W)[None, :]
    shifts, mask_rows = [], []
    for dy in range(3):
        for dx in range(3):
            oy, ox = dy - 1, dx - 1
            shifts.append((roll_sign * (oy * W + ox)) % Lb)
            valid = (hh + oy >= 0) & (hh + oy < H) & (ww + ox >= 0) & (ww + ox < W)
            mask_rows.append(valid.astype(jnp.float32).reshape(HW))
    masks = jnp.tile(jnp.stack(mask_rows), (1, Bt))                 # (9, Lb)

    const_args = [w1, w2, masks]
    const_specs = [
        pl.BlockSpec((CO, 9 * CI), lambda s: (0, 0)),               # w1 (resident)
        pl.BlockSpec((CO, 9 * CO), lambda s: (0, 0)),               # w2 (resident)
        pl.BlockSpec((9, Lb), lambda s: (0, 0)),                    # tap masks
    ]

    if learnable_sc:
        wsc = jnp.pad(params['csc_w'][:, :, 0, 0],
                      ((0, CO - Cout), (0, CI - Cin))).astype(jnp.bfloat16)
        bsc = jnp.pad(params['csc_b'], (0, CO - Cout)).astype(jnp.float32).reshape(CO, 1)
        const_args += [wsc, bsc]
        const_specs += [pl.BlockSpec((CO, CI), lambda s: (0, 0)),   # wsc
                        pl.BlockSpec((CO, 1), lambda s: (0, 0))]    # bsc

    if downsample:
        # Per-image 2x2 avg-pool as a (HW, HWo) 0/0.25 operator, block-diagonal
        # over the Bt images concatenated on the lane axis.
        oidx = (jnp.arange(H)[:, None] // 2) * Wo + (jnp.arange(W)[None, :] // 2)
        pool = (oidx.reshape(HW, 1) == jnp.arange(HWo)[None, :]).astype(jnp.float32) * 0.25
        pool_bd = jnp.kron(jnp.eye(Bt, dtype=jnp.float32), pool).astype(jnp.bfloat16)
        const_args += [pool_bd]
        const_specs += [pl.BlockSpec((Lb, Lbo), lambda s: (0, 0))]  # pool operator

    kernel = functools.partial(
        _resblock_kernel, shifts=tuple(shifts),
        learnable_sc=learnable_sc, downsample=downsample)

    call = pl.pallas_call(
        kernel,
        out_shape=jax.ShapeDtypeStruct((nsteps, CO, Lbo), jnp.float32),
        grid_spec=pltpu.PrefetchScalarGridSpec(
            num_scalar_prefetch=0,
            grid=(nsteps,),                                         # Bt images per step
            in_specs=[pl.BlockSpec((1, CI, Lb), lambda s: (s, 0, 0))] + const_specs,
            out_specs=pl.BlockSpec((1, CO, Lbo), lambda s: (s, 0, 0)),
        ),
        compiler_params=pltpu.CompilerParams(
            dimension_semantics=("parallel",),                      # batch steps independent
        ),
    )

    @jax.jit
    def forward(x_nchw):
        # NCHW -> (nsteps, CI, Bt*HW): images of a step concatenated on lanes.
        x = jnp.pad(x_nchw, ((0, Bp - B), (0, CI - Cin), (0, 0), (0, 0)))
        x = x.reshape(nsteps, Bt, CI, HW).transpose(0, 2, 1, 3).reshape(nsteps, CI, Lb)
        out = call(x.astype(jnp.float32), *const_args)              # (nsteps, CO, Lbo)
        out = out.reshape(nsteps, CO, Bt, HWo).transpose(0, 2, 1, 3)
        out = out.reshape(Bp, CO, Ho, Wo)[:B, :Cout]
        return out

    return forward


# ----------------------------------------------------------------------------
# Pure-JAX reference (f32, HIGHEST precision) for correctness check
# ----------------------------------------------------------------------------
def _conv_nchw_ref(x, w, b=None, pad=0):
    out = jax.lax.conv_general_dilated(
        x, w, window_strides=(1, 1), padding=[(pad, pad), (pad, pad)],
        dimension_numbers=('NCHW', 'OIHW', 'NCHW'),
        precision=jax.lax.Precision.HIGHEST)
    if b is not None:
        out = out + b[None, :, None, None]
    return out


def _avg_pool2_ref(x):
    B, C, H, W = x.shape
    return x.reshape(B, C, H // 2, 2, W // 2, 2).mean(axis=(3, 5))


def res_block_down_ref(x, params, *, downsample=True):
    learnable_sc = 'csc_w' in params
    h = jnp.maximum(x, 0.0)
    h = _conv_nchw_ref(h, params['c1_w'], pad=1)
    h = jnp.maximum(h, 0.0)
    h = _conv_nchw_ref(h, params['c2_w'], pad=1)
    if downsample:
        h = _avg_pool2_ref(h)
    s = x
    if learnable_sc:
        s = _conv_nchw_ref(s, params['csc_w'], params['csc_b'], pad=0)
    if downsample:
        s = _avg_pool2_ref(s)
    return h + s


# ----------------------------------------------------------------------------
if __name__ == "__main__":
    B, IN_DIM, OUT_DIM, IMG = 2, 4, 8, 16

    key = jax.random.PRNGKey(0)
    k1, k2, k3, k4, kx = jax.random.split(key, 5)
    params = {
        'c1_w': 0.05 * jax.random.normal(k1, (OUT_DIM, IN_DIM, 3, 3), jnp.float32),
        'c2_w': 0.05 * jax.random.normal(k2, (OUT_DIM, OUT_DIM, 3, 3), jnp.float32),
        'csc_w': 0.05 * jax.random.normal(k3, (OUT_DIM, IN_DIM, 1, 1), jnp.float32),
        'csc_b': 0.05 * jax.random.normal(k4, (OUT_DIM,), jnp.float32),
    }
    x = jax.random.normal(kx, (B, IN_DIM, IMG, IMG), jnp.float32)   # NCHW input

    # Constant prep / weight packing happens ONCE here; `forward` is the hot path.
    forward = make_res_block_down(params, x.shape, downsample=True)

    out = jax.block_until_ready(forward(x))
    ref = jax.block_until_ready(res_block_down_ref(x, params, downsample=True))

    assert out.shape == (B, OUT_DIM, IMG // 2, IMG // 2), out.shape
    # bf16 MXU operands with f32 accumulation: expected relative error ~1e-3.
    rel_err = float(jnp.max(jnp.abs(out - ref)) / (jnp.max(jnp.abs(ref)) + 1e-6))
    assert rel_err < 1e-2, f"mismatch vs reference: rel_err={rel_err}"
    print("KERNEL_OK")
</pallas_src>

<mosaic_0001>
module attributes {stable_mosaic.version = 11 : i64} {
  func.func @probe_kernel(%arg0: memref<8x128xi32, #tpu.memory_space<vmem>>, %arg1: memref<8x128xi32, #tpu.memory_space<vmem>>) attributes {dimension_semantics = [], scalar_prefetch = 0 : i64, scratch_operands = 0 : i64, tpu.core_type = #tpu.core_type<tc>} {
    %c0 = arith.constant 0 : index
    %c0_0 = arith.constant 0 : index
    %0 = vector.load %arg0[%c0, %c0_0] : memref<8x128xi32, #tpu.memory_space<vmem>>, vector<8x128xi32>
    %c1_i32 = arith.constant 1 : i32
    %1 = tpu.dynamic_rotate %0 by %c1_i32 dim 1 : vector<8x128xi32>, i32 -> vector<8x128xi32>
    %c0_1 = arith.constant 0 : index
    %c0_2 = arith.constant 0 : index
    %2 = vector.load %arg1[%c0_1, %c0_2] : memref<8x128xi32, #tpu.memory_space<vmem>>, vector<8x128xi32>
    tpu.vector_store %arg1[%c0_1, %c0_2], %1 {strides = array<i32>} : memref<8x128xi32, #tpu.memory_space<vmem>>, vector<8x128xi32>,
    return
  }
}

</mosaic_0001>

<llo_original>
// kernel: tpu_custom_call.1
$region0: #{tpu_custom_call.1}
  #allocation0 [shape = 'u32[]', space=smem, size = 0x4, offset = 0x4, fixed_abs, tag = 'smem constant byte address 0x4 - core index']
  #allocation1 [shape = 'u32[144,128]{1,0:T(1,128)}', space=vmem, size = 0x12000, scoped, tag = 'internal scratch']
  %s0 = inlined_call_operand.hbm [shape: s32[8,128], index: 0, kind: input, shape index: {}]
  %s1 = inlined_call_operand.hbm [shape: s32[8,128], index: 1, kind: output, shape index: {}]
  %s2 = sld [smem:[#allocation0]]
  $region18: #{tpu_custom_call.1} parent=0
    _
  %s4 = ssub.s32 1, %s2
  %s5 = scalar_select 0, %s4, %s2
  $region1: #{tpu_custom_call.1} parent=0
    #allocation2 [shape = 'u8[4096]{0}', space=vmem, size = 0x1000, scoped, tag = 'input window, operand 0, single buffered']
    #allocation3 [shape = 's32[1]{0}', space=sflag, size = 0x4, scoped, tag = 'scoped memory for tpu_custom_call.1']
    #allocation4 [shape = 's32[1]{0}', space=sflag, size = 0x4, scoped, tag = 'scoped memory for tpu_custom_call.1']
    #allocation5 [shape = 'u8[4096]{0}', space=vmem, size = 0x1000, scoped, tag = 'output window, operand 0, single buffered']
    %6 = vsyncpa [#allocation3], 0
    %7 = vsyncpa [#allocation4], 0
    // Predicated region
    $region2: #{tpu_custom_call.1} parent=1 // pred_check
      _
    $region3: #{tpu_custom_call.1} parent=1 // pred_check_branch
      %9 = sbr.rel (0) target = $region5
    $region4: #{tpu_custom_call.1} parent=1 // pred_region
      %s11 = ssub.s32 128, 128
      %12 = vsyncadd [#allocation3], %s11
      %s14 = sshll.u32 [#allocation2], 4
      %s15 = int_to_ptr.vmem [resolvable:$true] %s14
      %17 = dma.hbm_to_vmem [thread:$0]  %s0, 128, %s15, [#allocation3]
    $region5: #{tpu_custom_call.1} parent=1 // pred_fallthru
      _
    // Predicated region
    $region6: #{tpu_custom_call.1} parent=1 // pred_check
      _
    $region7: #{tpu_custom_call.1} parent=1 // pred_check_branch
      %19 = sbr.rel (0) target = $region9
    $region8: #{tpu_custom_call.1} parent=1 // pred_region
      %20 = dma.done [#allocation3], 128
    $region9: #{tpu_custom_call.1} parent=1 // pred_fallthru
      _
    %v21 = vld [vmem:[#allocation2] sm:$0xff]
    %22 = vrot.lane.b32.xlu0 %v21, 1
    %v23 = vpop.permute.xlu0 %22
    %24 = vst [vmem:[#allocation5] sm:$0xff] %v23
    // Predicated region
    $region10: #{tpu_custom_call.1} parent=1 // pred_check
      _
    $region11: #{tpu_custom_call.1} parent=1 // pred_check_branch
      %26 = sbr.rel (0) target = $region13
    $region12: #{tpu_custom_call.1} parent=1 // pred_region
      %s28 = ssub.s32 128, 128
      %29 = vsyncadd [#allocation4], %s28
      %s31 = sshll.u32 [#allocation5], 4
      %s32 = int_to_ptr.vmem [resolvable:$true] %s31
      %34 = dma.vmem_to_hbm [thread:$0]  %s32, 128, %s1, [#allocation4]
    $region13: #{tpu_custom_call.1} parent=1 // pred_fallthru
      _
    // Predicated region
    $region14: #{tpu_custom_call.1} parent=1 // pred_check
      _
    $region15: #{tpu_custom_call.1} parent=1 // pred_check_branch
      %36 = sbr.rel (0) target = $region17
    $region16: #{tpu_custom_call.1} parent=1 // pred_region
      %37 = dma.done [#allocation4], 128
    $region17: #{tpu_custom_call.1} parent=1 // pred_fallthru
      _
    %38 = vsyncpa [#allocation3], 1
    %39 = vsyncpa [#allocation4], 1

</llo_original>
